<compile_context>
chip_gen: v7x
topology: tpu7x:2x2x1
jax: 0.10.0
libtpu: 0.0.40
codegen_flags: <defaults>
</compile_context>

<pallas_src>
import functools

import jax
import jax.numpy as jnp
from jax.experimental import pallas as pl
from jax.experimental.pallas import tpu as pltpu

LANE = 128          # lane (last-dim) granularity
SUBLANE = 8         # f32 sublane granularity
NEG_BIG = -1e30     # bias for padded output classes -> exp(-1e30 - m) == 0
VMEM_BUDGET = 40 * 1024 * 1024   # conservative: fits v7x's 64 MiB with headroom


def _round_up(n, m):
    return (n + m - 1) // m * m


def _choose_tm(batch, d_in_p, d_out_p, h_p):
    """Rows per grid step: as large as a ~40 MiB VMEM budget allows (<=512)."""
    resident = (d_in_p * h_p + h_p * d_out_p) * 2 + (h_p + d_out_p) * 4  # Buffered(1)
    per_row = 2 * (d_in_p * 2 + d_out_p * 4 + LANE * 4)   # double-buffered tiles
    avail = max(VMEM_BUDGET - resident, per_row * SUBLANE)
    tm = max(SUBLANE, min(512, avail // per_row) // SUBLANE * SUBLANE)
    return min(tm, _round_up(batch, SUBLANE))


def mlp_kernel(x_ref, w1_ref, b1_ref, w3_ref, b3_ref, argmax_ref, softmax_ref):
    # fc1 + ReLU: bf16 MXU matmul, f32 accumulate, f32 elementwise.
    h = jnp.dot(x_ref[...], w1_ref[...], preferred_element_type=jnp.float32)
    h = jnp.maximum(h + b1_ref[...], 0.0)                       # (TM, H_p) f32

    # fc3: bf16 MXU matmul, f32 accumulate. Padded classes carry -1e30 bias.
    logits = jnp.dot(h.astype(jnp.bfloat16), w3_ref[...],
                     preferred_element_type=jnp.float32) + b3_ref[...]  # (TM, D_out_p)

    # Numerically stable softmax over the lane-padded class dim; padded classes
    # contribute exp(-1e30 - m) == 0, so normalization over real classes is exact.
    m = jnp.max(logits, axis=-1, keepdims=True)
    e = jnp.exp(logits - m)
    denom = jnp.sum(e, axis=-1, keepdims=True)
    softmax_ref[...] = e * pl.reciprocal(denom, approx=True)

    # First-occurrence argmax via iota + masked min; broadcast across the lane
    # dim so the store is a full (TM, 128) unmasked vst (host slices [:, 0]).
    col = jax.lax.broadcasted_iota(jnp.int32, logits.shape, dimension=1)
    masked = jnp.where(logits == m, col, jnp.iinfo(jnp.int32).max)
    idx = jnp.min(masked, axis=-1, keepdims=True)               # (TM, 1) i32
    argmax_ref[...] = jnp.broadcast_to(idx, argmax_ref.shape)   # (TM, LANE) i32


def prepare_mlp_params(w1, b1, w3, b3):
    """Pad / cast the weights ONCE (reused across forward calls)."""
    d_in, hidden = w1.shape
    d_out = w3.shape[1]
    d_in_p = _round_up(d_in, LANE)
    h_p = _round_up(hidden, LANE)
    d_out_p = _round_up(d_out, LANE)

    w1_p = jnp.zeros((d_in_p, h_p), jnp.bfloat16).at[:d_in, :hidden].set(
        w1.astype(jnp.bfloat16))
    b1_p = jnp.zeros((1, h_p), jnp.float32).at[0, :hidden].set(
        b1.astype(jnp.float32))
    w3_p = jnp.zeros((h_p, d_out_p), jnp.bfloat16).at[:hidden, :d_out].set(
        w3.astype(jnp.bfloat16))
    b3_p = jnp.full((1, d_out_p), NEG_BIG, jnp.float32).at[0, :d_out].set(
        b3.astype(jnp.float32))
    return (w1_p, b1_p, w3_p, b3_p, d_out)


@functools.partial(jax.jit, static_argnums=(5,))
def _mlp_forward_padded(x_nchw, w1_p, b1_p, w3_p, b3_p, d_out):
    B = x_nchw.shape[0]
    d_in_p, h_p = w1_p.shape
    d_out_p = w3_p.shape[1]

    # Flatten NCHW -> (B, C*H*W), same row-major order as torch.flatten; cast
    # straight to bf16 (no f32 round trip).
    x = x_nchw.reshape(B, -1).astype(jnp.bfloat16)
    d_in = x.shape[1]

    TM = _choose_tm(B, d_in_p, d_out_p, h_p)
    b_p = _round_up(B, TM)
    num_steps = b_p // TM

    x_p = jnp.zeros((b_p, d_in_p), jnp.bfloat16).at[:B, :d_in].set(x)

    # --- VMEM footprint & limit -------------------------------------------
    resident_bytes = (w1_p.size + w3_p.size) * 2 + (b1_p.size + b3_p.size) * 4
    pipelined_bytes = 2 * TM * (d_in_p * 2 + d_out_p * 4 + LANE * 4)
    vmem_limit = int((resident_bytes + pipelined_bytes) * 1.25) + (1 << 20)
    vmem_limit = min(max(vmem_limit, 8 << 20), 56 << 20)   # floor 8 MiB, cap < v7x 64 MiB

    # CORE_PARALLEL engages both TensorCores on v7x when there are >= 2 steps;
    # single-step toy case stays on the plain parallel semantic.
    dim_sem = (pltpu.CORE_PARALLEL if num_steps >= 2 else pltpu.PARALLEL,)

    weight_mode = pl.Buffered(1)   # constant index_map -> single VMEM buffer

    flops = 2 * b_p * (d_in_p * h_p + h_p * d_out_p)
    transcendentals = b_p * (d_out_p + 1)                 # exp tile + reciprocal
    bytes_accessed = (
        b_p * d_in_p * 2 + resident_bytes                 # bf16 x + weights/biases
        + b_p * LANE * 4 + b_p * d_out_p * 4              # i32 + f32 outputs
    )

    # TODO(synk): if d_in_p grows beyond VMEM residency (hit first on v7x), add
    # a K grid axis over d_in_p with an f32 accumulator instead of shrinking TM.
    argmax2d, softmax_p = pl.pallas_call(
        mlp_kernel,
        out_shape=(
            jax.ShapeDtypeStruct((b_p, LANE), jnp.int32),
            jax.ShapeDtypeStruct((b_p, d_out_p), jnp.float32),
        ),
        grid_spec=pltpu.PrefetchScalarGridSpec(
            num_scalar_prefetch=0,
            grid=(num_steps,),
            in_specs=[
                pl.BlockSpec((TM, d_in_p), lambda i: (i, 0)),    # x tile (pipelined)
                pl.BlockSpec((d_in_p, h_p), lambda i: (0, 0),
                             pipeline_mode=weight_mode),         # w1 (resident, 1 buf)
                pl.BlockSpec((1, h_p), lambda i: (0, 0),
                             pipeline_mode=weight_mode),         # b1 (resident, 1 buf)
                pl.BlockSpec((h_p, d_out_p), lambda i: (0, 0),
                             pipeline_mode=weight_mode),         # w3 (resident, 1 buf)
                pl.BlockSpec((1, d_out_p), lambda i: (0, 0),
                             pipeline_mode=weight_mode),         # b3 (resident, 1 buf)
            ],
            out_specs=(
                pl.BlockSpec((TM, LANE), lambda i: (i, 0)),      # argmax (lane-dense)
                pl.BlockSpec((TM, d_out_p), lambda i: (i, 0)),   # softmax (lane-dense)
            ),
        ),
        compiler_params=pltpu.CompilerParams(
            dimension_semantics=dim_sem,
            vmem_limit_bytes=vmem_limit,
        ),
        cost_estimate=pl.CostEstimate(
            flops=flops,
            transcendentals=transcendentals,
            bytes_accessed=bytes_accessed,
        ),
    )(x_p, w1_p, b1_p, w3_p, b3_p)

    # Strip batch/lane padding. TODO(synk): PyTorch returns int64 indices; we
    # keep int32 on TPU (index values identical).
    return argmax2d[:B, 0], softmax_p[:B, :d_out]


def mlp_forward(x_nchw, params):
    w1_p, b1_p, w3_p, b3_p, d_out = params
    return _mlp_forward_padded(x_nchw, w1_p, b1_p, w3_p, b3_p, d_out)


def init_linear_params(key, in_features, out_features):
    """Deterministic init matching torch.nn.Linear's U(-1/sqrt(fan_in), ...)."""
    k_w, k_b = jax.random.split(key)
    bound = 1.0 / jnp.sqrt(jnp.float32(in_features))
    # stored as (in, out) == torch weight transposed
    w = jax.random.uniform(k_w, (in_features, out_features), jnp.float32, -bound, bound)
    b = jax.random.uniform(k_b, (out_features,), jnp.float32, -bound, bound)
    return w, b


if __name__ == "__main__":
    # Small shapes consistent with the module: image-like input flattened by forward().
    B, C, H, W = 2, 4, 8, 8          # -> input_dim = 256
    input_dim = C * H * W
    hidden_dim = 32
    output_dim = 8

    key = jax.random.PRNGKey(0)
    k_x, k_fc1, k_fc3 = jax.random.split(key, 3)

    x = jax.random.normal(k_x, (B, C, H, W), jnp.float32)
    w1, b1 = init_linear_params(k_fc1, input_dim, hidden_dim)
    w3, b3 = init_linear_params(k_fc3, hidden_dim, output_dim)

    params = prepare_mlp_params(w1, b1, w3, b3)   # pad/cast weights once
    argmax_out, softmax_out = mlp_forward(x, params)
    jax.block_until_ready((argmax_out, softmax_out))

    # Reference at the same precision (bf16 matmul inputs, f32 accumulation).
    xf = x.reshape(B, -1)
    h_ref = jnp.maximum(
        jnp.dot(xf.astype(jnp.bfloat16), w1.astype(jnp.bfloat16),
                preferred_element_type=jnp.float32) + b1, 0.0)
    logits_ref = jnp.dot(h_ref.astype(jnp.bfloat16), w3.astype(jnp.bfloat16),
                         preferred_element_type=jnp.float32) + b3
    sm_ref = jax.nn.softmax(logits_ref, axis=-1)
    am_ref = jnp.argmax(logits_ref, axis=-1).astype(jnp.int32)

    # Tolerance accounts for approx reciprocal + MXU accumulation order.
    assert jnp.allclose(softmax_out, sm_ref, atol=3e-3, rtol=3e-3), (
        softmax_out, sm_ref)
    assert jnp.array_equal(argmax_out, am_ref), (argmax_out, am_ref)

    print("KERNEL_OK")
</pallas_src>

<mosaic_0001>
module attributes {stable_mosaic.version = 11 : i64} {
  func.func @mlp_kernel(%arg0: i32, %arg1: memref<8x256xbf16, #tpu.memory_space<vmem>>, %arg2: memref<256x128xbf16, #tpu.memory_space<vmem>>, %arg3: memref<1x128xf32, #tpu.memory_space<vmem>>, %arg4: memref<128x128xbf16, #tpu.memory_space<vmem>>, %arg5: memref<1x128xf32, #tpu.memory_space<vmem>>, %arg6: memref<8x128xi32, #tpu.memory_space<vmem>>, %arg7: memref<8x128xf32, #tpu.memory_space<vmem>>) attributes {dimension_semantics = [#tpu.dimension_semantics<parallel>], iteration_bounds = array<i64: 1>, scalar_prefetch = 0 : i64, scratch_operands = 0 : i64, tpu.core_type = #tpu.core_type<tc>, window_params = [{transform_indices = @transform_0, window_bounds = array<i64: 8, 256>}, {pipeline_mode = #tpu.pipeline_mode<synchronous>, transform_indices = @transform_1, window_bounds = array<i64: 256, 128>}, {pipeline_mode = #tpu.pipeline_mode<synchronous>, transform_indices = @transform_2, window_bounds = array<i64: 1, 128>}, {pipeline_mode = #tpu.pipeline_mode<synchronous>, transform_indices = @transform_3, window_bounds = array<i64: 128, 128>}, {pipeline_mode = #tpu.pipeline_mode<synchronous>, transform_indices = @transform_4, window_bounds = array<i64: 1, 128>}, {transform_indices = @transform_5, window_bounds = array<i64: 8, 128>}, {transform_indices = @transform_6, window_bounds = array<i64: 8, 128>}]} {
    %c0 = arith.constant 0 : index
    %c0_0 = arith.constant 0 : index
    %0 = vector.load %arg1[%c0, %c0_0] : memref<8x256xbf16, #tpu.memory_space<vmem>>, vector<8x256xbf16>
    %c0_1 = arith.constant 0 : index
    %c0_2 = arith.constant 0 : index
    %1 = vector.load %arg2[%c0_1, %c0_2] : memref<256x128xbf16, #tpu.memory_space<vmem>>, vector<256x128xbf16>
    %cst = arith.constant dense<0.000000e+00> : vector<8x128xf32>
    %2 = tpu.matmul %0, %1, %cst {dimension_numbers = #tpu.dot_dimension_numbers<[1], [0], [0], [1], [0, 0, 1, 1], [], []>} : vector<8x256xbf16>, vector<256x128xbf16>, vector<8x128xf32> -> vector<8x128xf32>
    %c0_3 = arith.constant 0 : index
    %c0_4 = arith.constant 0 : index
    %3 = vector.load %arg3[%c0_3, %c0_4] : memref<1x128xf32, #tpu.memory_space<vmem>>, vector<1x128xf32>
    %4 = vector.broadcast %3 : vector<1x128xf32> to vector<8x128xf32>
    %5 = arith.addf %2, %4 : vector<8x128xf32>
    %cst_5 = arith.constant 0.000000e+00 : f32
    %6 = vector.broadcast %cst_5 : f32 to vector<8x128xf32>
    %7 = arith.maximumf %5, %6 : vector<8x128xf32>
    %8 = arith.truncf %7 : vector<8x128xf32> to vector<8x128xbf16>
    %c0_6 = arith.constant 0 : index
    %c0_7 = arith.constant 0 : index
    %9 = vector.load %arg4[%c0_6, %c0_7] : memref<128x128xbf16, #tpu.memory_space<vmem>>, vector<128x128xbf16>
    %cst_8 = arith.constant dense<0.000000e+00> : vector<8x128xf32>
    %10 = tpu.matmul %8, %9, %cst_8 {dimension_numbers = #tpu.dot_dimension_numbers<[1], [0], [0], [1], [0, 0, 1, 1], [], []>} : vector<8x128xbf16>, vector<128x128xbf16>, vector<8x128xf32> -> vector<8x128xf32>
    %c0_9 = arith.constant 0 : index
    %c0_10 = arith.constant 0 : index
    %11 = vector.load %arg5[%c0_9, %c0_10] : memref<1x128xf32, #tpu.memory_space<vmem>>, vector<1x128xf32>
    %12 = vector.broadcast %11 : vector<1x128xf32> to vector<8x128xf32>
    %13 = arith.addf %10, %12 : vector<8x128xf32>
    %cst_11 = arith.constant dense<0xFF800000> : vector<8xf32>
    %14 = vector.multi_reduction <maximumf>, %13, %cst_11 [1] : vector<8x128xf32> to vector<8xf32>
    %15 = vector.shape_cast %14 : vector<8xf32> to vector<8x1xf32>
    %16 = vector.broadcast %15 : vector<8x1xf32> to vector<8x128xf32>
    %17 = arith.subf %13, %16 : vector<8x128xf32>
    %18 = math.exp %17 : vector<8x128xf32>
    %cst_12 = arith.constant dense<0.000000e+00> : vector<8xf32>
    %19 = vector.multi_reduction <add>, %18, %cst_12 [1] : vector<8x128xf32> to vector<8xf32>
    %20 = vector.shape_cast %19 : vector<8xf32> to vector<8x1xf32>
    %21 = tpu.reciprocal %20 {approx = true} : vector<8x1xf32> -> vector<8x1xf32>
    %22 = vector.broadcast %21 : vector<8x1xf32> to vector<8x128xf32>
    %23 = arith.mulf %18, %22 : vector<8x128xf32>
    %c0_13 = arith.constant 0 : index
    %c0_14 = arith.constant 0 : index
    %24 = vector.load %arg7[%c0_13, %c0_14] : memref<8x128xf32, #tpu.memory_space<vmem>>, vector<8x128xf32>
    tpu.vector_store %arg7[%c0_13, %c0_14], %23 {strides = array<i32>} : memref<8x128xf32, #tpu.memory_space<vmem>>, vector<8x128xf32>,
    %25 = tpu.iota {dimensions = array<i32: 1>} : vector<8x128xi32>
    %26 = vector.broadcast %15 : vector<8x1xf32> to vector<8x128xf32>
    %27 = arith.cmpf oeq, %13, %26 : vector<8x128xf32>
    %c2147483647_i32 = arith.constant 2147483647 : i32
    %28 = vector.broadcast %c2147483647_i32 : i32 to vector<8x128xi32>
    %29 = arith.select %27, %25, %28 : vector<8x128xi1>, vector<8x128xi32>
    %cst_15 = arith.constant dense<2147483647> : vector<8xi32>
    %30 = vector.multi_reduction <minsi>, %29, %cst_15 [1] : vector<8x128xi32> to vector<8xi32>
    %31 = vector.shape_cast %30 : vector<8xi32> to vector<8x1xi32>
    %32 = vector.shape_cast %31 : vector<8x1xi32> to vector<8x1xi32>
    %33 = vector.broadcast %32 : vector<8x1xi32> to vector<8x128xi32>
    %c0_16 = arith.constant 0 : index
    %c0_17 = arith.constant 0 : index
    %34 = vector.load %arg6[%c0_16, %c0_17] : memref<8x128xi32, #tpu.memory_space<vmem>>, vector<8x128xi32>
    tpu.vector_store %arg6[%c0_16, %c0_17], %33 {strides = array<i32>} : memref<8x128xi32, #tpu.memory_space<vmem>>, vector<8x128xi32>,
    return
  }
  func.func @transform_0(%arg0: i32) -> (i32, i32) {
    %c0_i32 = arith.constant 0 : i32
    %c0_i32_0 = arith.constant 0 : i32
    return %arg0, %c0_i32 : i32, i32
  }
  func.func @transform_1(%arg0: i32) -> (i32, i32) {
    %c0_i32 = arith.constant 0 : i32
    %c0_i32_0 = arith.constant 0 : i32
    %c0_i32_1 = arith.constant 0 : i32
    return %c0_i32, %c0_i32_0 : i32, i32
  }
  func.func @transform_2(%arg0: i32) -> (i32, i32) {
    %c0_i32 = arith.constant 0 : i32
    %c0_i32_0 = arith.constant 0 : i32
    %c0_i32_1 = arith.constant 0 : i32
    return %c0_i32, %c0_i32_0 : i32, i32
  }
  func.func @transform_3(%arg0: i32) -> (i32, i32) {
    %c0_i32 = arith.constant 0 : i32
    %c0_i32_0 = arith.constant 0 : i32
    %c0_i32_1 = arith.constant 0 : i32
    return %c0_i32, %c0_i32_0 : i32, i32
  }
  func.func @transform_4(%arg0: i32) -> (i32, i32) {
    %c0_i32 = arith.constant 0 : i32
    %c0_i32_0 = arith.constant 0 : i32
    %c0_i32_1 = arith.constant 0 : i32
    return %c0_i32, %c0_i32_0 : i32, i32
  }
  func.func @transform_5(%arg0: i32) -> (i32, i32) {
    %c0_i32 = arith.constant 0 : i32
    %c0_i32_0 = arith.constant 0 : i32
    return %arg0, %c0_i32 : i32, i32
  }
  func.func @transform_6(%arg0: i32) -> (i32, i32) {
    %c0_i32 = arith.constant 0 : i32
    %c0_i32_0 = arith.constant 0 : i32
    return %arg0, %c0_i32 : i32, i32
  }
}

</mosaic_0001>

<llo_original>
// kernel: _mlp_forward_padded.1
$region0: #{_mlp_forward_padded.1}
  #allocation0 [shape = 'u32[]', space=smem, size = 0x4, offset = 0x4, fixed_abs, tag = 'smem constant byte address 0x4 - core index']
  #allocation1 [shape = 'u32[144,128]{1,0:T(1,128)}', space=vmem, size = 0x12000, scoped, tag = 'internal scratch']
  %s0 = inlined_call_operand.vmem [shape: bf16[8,256], index: 0, kind: input, shape index: {}]
  %s1 = inlined_call_operand.vmem [shape: bf16[256,128], index: 1, kind: input, shape index: {}]
  %s2 = inlined_call_operand.vmem [shape: f32[1,128], index: 2, kind: input, shape index: {}]
  %s3 = inlined_call_operand.hbm [shape: bf16[128,128], index: 3, kind: input, shape index: {}]
  %s4 = inlined_call_operand.vmem [shape: f32[1,128], index: 4, kind: input, shape index: {}]
  %s5 = inlined_call_operand.vmem [shape: s32[8,128], index: 5, kind: output, shape index: {0}]
  %s6 = inlined_call_operand.vmem [shape: f32[8,128], index: 6, kind: output, shape index: {1}]
  %7 = xla_tuple %s5, %s6
  %s8 = sld [smem:[#allocation0]]
  $region42: #{_mlp_forward_padded.1} parent=0
    _
  %s10 = ssub.s32 1, %s8
  %s11 = scalar_select 0, %s10, %s8
  $region1: #{_mlp_forward_padded.1} parent=0
    #allocation2 [shape = 'u8[32768]{0}', space=vmem, size = 0x8000, scoped, tag = 'input window, operand 3, single buffered']
    #allocation3 [shape = 's32[1]{0}', space=sflag, size = 0x4, scoped, tag = 'scoped memory for _mlp_forward_padded.1']
    %12 = vsyncpa [#allocation3], 0
    // Predicated region
    $region2: #{_mlp_forward_padded.1} parent=1 // pred_check
      _
    $region3: #{_mlp_forward_padded.1} parent=1 // pred_check_branch
      %14 = sbr.rel (0) target = $region5
    $region4: #{_mlp_forward_padded.1} parent=1 // pred_region
      _
    $region5: #{_mlp_forward_padded.1} parent=1 // pred_fallthru
      _
    // Predicated region
    $region6: #{_mlp_forward_padded.1} parent=1 // pred_check
      _
    $region7: #{_mlp_forward_padded.1} parent=1 // pred_check_branch
      %16 = sbr.rel (0) target = $region9
    $region8: #{_mlp_forward_padded.1} parent=1 // pred_region
      _
    $region9: #{_mlp_forward_padded.1} parent=1 // pred_fallthru
      _
    // Predicated region
    $region10: #{_mlp_forward_padded.1} parent=1 // pred_check
      _
    $region11: #{_mlp_forward_padded.1} parent=1 // pred_check_branch
      %18 = sbr.rel (0) target = $region13
    $region12: #{_mlp_forward_padded.1} parent=1 // pred_region
      _
    $region13: #{_mlp_forward_padded.1} parent=1 // pred_fallthru
      _
    // Predicated region
    $region14: #{_mlp_forward_padded.1} parent=1 // pred_check
      _
    $region15: #{_mlp_forward_padded.1} parent=1 // pred_check_branch
      %20 = sbr.rel (0) target = $region17
    $region16: #{_mlp_forward_padded.1} parent=1 // pred_region
      %s22 = ssub.s32 1024, 1024
      %23 = vsyncadd [#allocation3], %s22
      %s24 = sshll.u32 [#allocation2], 4
      %s25 = int_to_ptr.vmem [resolvable:$true] %s24
      %30 = dma.hbm_to_vmem [thread:$0]  %s3, 1024, %s25, [#allocation3], 64, 64, 4
    $region17: #{_mlp_forward_padded.1} parent=1 // pred_fallthru
      _
    // Predicated region
    $region18: #{_mlp_forward_padded.1} parent=1 // pred_check
      _
    $region19: #{_mlp_forward_padded.1} parent=1 // pred_check_branch
      %32 = sbr.rel (0) target = $region21
    $region20: #{_mlp_forward_padded.1} parent=1 // pred_region
      _
    $region21: #{_mlp_forward_padded.1} parent=1 // pred_fallthru
      _
    // Predicated region
    $region22: #{_mlp_forward_padded.1} parent=1 // pred_check
      _
    $region23: #{_mlp_forward_padded.1} parent=1 // pred_check_branch
      %34 = sbr.rel (0) target = $region25
    $region24: #{_mlp_forward_padded.1} parent=1 // pred_region
      %35 = dma.done [#allocation3], 1024
    $region25: #{_mlp_forward_padded.1} parent=1 // pred_fallthru
      _
    %v37 = vld [vmem:[%s0] sm:$0xff]
    %v38 = vld [vmem:[%s1] sm:$0xf]
    %v39 = vld [vmem:[%s1 + $0x4] sm:$0xf]
    %v40 = vld [vmem:[%s1 + $0x8] sm:$0xf]
    %v41 = vld [vmem:[%s1 + $0xc] sm:$0xf]
    %v42 = vld [vmem:[%s1 + $0x10] sm:$0xf]
    %v43 = vld [vmem:[%s1 + $0x14] sm:$0xf]
    %v44 = vld [vmem:[%s1 + $0x18] sm:$0xf]
    %v45 = vld [vmem:[%s1 + $0x1c] sm:$0xf]
    %v46 = vld [vmem:[%s1 + $0x20] sm:$0xf]
    %v47 = vld [vmem:[%s1 + $0x24] sm:$0xf]
    %v48 = vld [vmem:[%s1 + $0x28] sm:$0xf]
    %v49 = vld [vmem:[%s1 + $0x2c] sm:$0xf]
    %v50 = vld [vmem:[%s1 + $0x30] sm:$0xf]
    %v51 = vld [vmem:[%s1 + $0x34] sm:$0xf]
    %v52 = vld [vmem:[%s1 + $0x38] sm:$0xf]
    %v53 = vld [vmem:[%s1 + $0x3c] sm:$0xf]
    %v54 = vld [vmem:[%s1 + $0x40] sm:$0xf]
    %v55 = vld [vmem:[%s1 + $0x44] sm:$0xf]
    %v56 = vld [vmem:[%s1 + $0x48] sm:$0xf]
    %v57 = vld [vmem:[%s1 + $0x4c] sm:$0xf]
    %v58 = vld [vmem:[%s1 + $0x50] sm:$0xf]
    %v59 = vld [vmem:[%s1 + $0x54] sm:$0xf]
    %v60 = vld [vmem:[%s1 + $0x58] sm:$0xf]
    %v61 = vld [vmem:[%s1 + $0x5c] sm:$0xf]
    %v62 = vld [vmem:[%s1 + $0x60] sm:$0xf]
    %v63 = vld [vmem:[%s1 + $0x64] sm:$0xf]
    %v64 = vld [vmem:[%s1 + $0x68] sm:$0xf]
    %v65 = vld [vmem:[%s1 + $0x6c] sm:$0xf]
    %v66 = vld [vmem:[%s1 + $0x70] sm:$0xf]
    %v67 = vld [vmem:[%s1 + $0x74] sm:$0xf]
    %v68 = vld [vmem:[%s1 + $0x78] sm:$0xf]
    %v69 = vld [vmem:[%s1 + $0x7c] sm:$0xf]
    %v70 = vld [vmem:[%s2] sm:$0x1]
    %v72 = vlaneseq
    %v73 = vshrl.u32 %v72, 7
    %v74 = vsub.s32 0, %v73
    %v75 = vrot.slane %v70, %v74
    %v78 = vunpack.c.l.b16 %v37
    %v79 = vunpack.c.h.b16 %v37
    %v80 = vpack.c.b16 %v78, %v78
    %v81 = vpack.c.b16 %v79, %v79
    %v116 = vunpack.c.l.b16 %v38
    %v117 = vunpack.c.l.b16 %v39
    %v118 = vunpack.c.l.b16 %v40
    %v119 = vunpack.c.l.b16 %v41
    %v120 = vunpack.c.l.b16 %v42
    %v121 = vunpack.c.l.b16 %v43
    %v122 = vunpack.c.l.b16 %v44
    %v123 = vunpack.c.l.b16 %v45
    %v124 = vunpack.c.l.b16 %v46
    %v125 = vunpack.c.l.b16 %v47
    %v126 = vunpack.c.l.b16 %v48
    %v127 = vunpack.c.l.b16 %v49
    %v128 = vunpack.c.l.b16 %v50
    %v129 = vunpack.c.l.b16 %v51
    %v130 = vunpack.c.l.b16 %v52
    %v131 = vunpack.c.l.b16 %v53
    %v132 = vunpack.c.l.b16 %v54
    %v133 = vunpack.c.l.b16 %v55
    %v134 = vunpack.c.l.b16 %v56
    %v135 = vunpack.c.l.b16 %v57
    %v136 = vunpack.c.l.b16 %v58
    %v137 = vunpack.c.l.b16 %v59
    %v138 = vunpack.c.l.b16 %v60
    %v139 = vunpack.c.l.b16 %v61
    %v140 = vunpack.c.l.b16 %v62
    %v141 = vunpack.c.l.b16 %v63
    %v142 = vunpack.c.l.b16 %v64
    %v143 = vunpack.c.l.b16 %v65
    %v144 = vunpack.c.l.b16 %v66
    %v145 = vunpack.c.l.b16 %v67
    %v146 = vunpack.c.l.b16 %v68
    %v147 = vunpack.c.l.b16 %v69
    %v148 = vpack.c.b16 %v117, %v116
    %v149 = vpack.c.b16 %v119, %v118
    %v150 = vpack.c.b16 %v121, %v120
    %v151 = vpack.c.b16 %v123, %v122
    %v152 = vpack.c.b16 %v125, %v124
    %v153 = vpack.c.b16 %v127, %v126
    %v154 = vpack.c.b16 %v129, %v128
    %v155 = vpack.c.b16 %v131, %v130
    %v156 = vpack.c.b16 %v133, %v132
    %v157 = vpack.c.b16 %v135, %v134
    %v158 = vpack.c.b16 %v137, %v136
    %v159 = vpack.c.b16 %v139, %v138
    %v160 = vpack.c.b16 %v141, %v140
    %v161 = vpack.c.b16 %v143, %v142
    %v162 = vpack.c.b16 %v145, %v144
    %v163 = vpack.c.b16 %v147, %v146
    %180 = vmatprep.subr.bf16.mxu0 0
    %181 = vmatpush1.bf16.msra.mxu0 %v148
    %182 = vmatprep.subr.bf16.mxu0 0
    %183 = vmatpush1.bf16.msra.mxu0 %v149
    %184 = vmatprep.subr.bf16.mxu0 0
    %185 = vmatpush1.bf16.msra.mxu0 %v150
    %186 = vmatprep.subr.bf16.mxu0 0
    %187 = vmatpush1.bf16.msra.mxu0 %v151
    %188 = vmatprep.subr.bf16.mxu0 0
    %189 = vmatpush1.bf16.msra.mxu0 %v152
    %190 = vmatprep.subr.bf16.mxu0 0
    %191 = vmatpush1.bf16.msra.mxu0 %v153
    %192 = vmatprep.subr.bf16.mxu0 0
    %193 = vmatpush1.bf16.msra.mxu0 %v154
    %194 = vmatprep.subr.bf16.mxu0 0
    %195 = vmatpush1.bf16.msra.mxu0 %v155
    %196 = vmatprep.subr.bf16.mxu0 0
    %197 = vmatpush1.bf16.msra.mxu0 %v156
    %198 = vmatprep.subr.bf16.mxu0 0
    %199 = vmatpush1.bf16.msra.mxu0 %v157
    %200 = vmatprep.subr.bf16.mxu0 0
    %201 = vmatpush1.bf16.msra.mxu0 %v158
    %202 = vmatprep.subr.bf16.mxu0 0
    %203 = vmatpush1.bf16.msra.mxu0 %v159
    %204 = vmatprep.subr.bf16.mxu0 0
    %205 = vmatpush1.bf16.msra.mxu0 %v160
    %206 = vmatprep.subr.bf16.mxu0 0
    %207 = vmatpush1.bf16.msra.mxu0 %v161
    %208 = vmatprep.subr.bf16.mxu0 0
    %209 = vmatpush1.bf16.msra.mxu0 %v162
    %210 = vmatprep.subr.bf16.mxu0 0
    %211 = vmatpush1.bf16.msra.mxu0 %v163
    %212 = vmatprep.mubr.bf16.mxu0 %v81
    %213 = vmatmul.mubr.bf16.gmra.mrb[0].mxu0 %v80
    %v214 = vpop.f32.mrb[0].mxu0
    %v215 = vadd.f32 %v75, %v214
    %v216 = vpop.f32.mrb[0].mxu0
    %v217 = vpop.f32.mrb[0].mxu0
    %v218 = vpop.f32.mrb[0].mxu0
    %219 = vdwg.mxu0
    %v220 = vmax.f32 %v215, 0.0
    %v221 = vpack.c.bf16 %v220, %v220
    %v222 = vld [vmem:[#allocation2] sm:$0xf]
    %v223 = vld [vmem:[#allocation2 + $0x4] sm:$0xf]
    %v224 = vld [vmem:[#allocation2 + $0x8] sm:$0xf]
    %v225 = vld [vmem:[#allocation2 + $0xc] sm:$0xf]
    %v226 = vld [vmem:[#allocation2 + $0x10] sm:$0xf]
    %v227 = vld [vmem:[#allocation2 + $0x14] sm:$0xf]
    %v228 = vld [vmem:[#allocation2 + $0x18] sm:$0xf]
    %v229 = vld [vmem:[#allocation2 + $0x1c] sm:$0xf]
    %v230 = vld [vmem:[#allocation2 + $0x20] sm:$0xf]
    %v231 = vld [vmem:[#allocation2 + $0x24] sm:$0xf]
    %v232 = vld [vmem:[#allocation2 + $0x28] sm:$0xf]
    %v233 = vld [vmem:[#allocation2 + $0x2c] sm:$0xf]
    %v234 = vld [vmem:[#allocation2 + $0x30] sm:$0xf]
    %v235 = vld [vmem:[#allocation2 + $0x34] sm:$0xf]
    %v236 = vld [vmem:[#allocation2 + $0x38] sm:$0xf]
    %v237 = vld [vmem:[#allocation2 + $0x3c] sm:$0xf]
    %v238 = vld [vmem:[%s4] sm:$0x1]
    %v240 = vlaneseq
    %v241 = vshrl.u32 %v240, 7
    %v242 = vsub.s32 0, %v241
    %v243 = vrot.slane %v238, %v242
    %v261 = vunpack.c.l.b16 %v222
    %v262 = vunpack.c.l.b16 %v223
    %v263 = vunpack.c.l.b16 %v224
    %v264 = vunpack.c.l.b16 %v225
    %v265 = vunpack.c.l.b16 %v226
    %v266 = vunpack.c.l.b16 %v227
    %v267 = vunpack.c.l.b16 %v228
    %v268 = vunpack.c.l.b16 %v229
    %v269 = vunpack.c.l.b16 %v230
    %v270 = vunpack.c.l.b16 %v231
    %v271 = vunpack.c.l.b16 %v232
    %v272 = vunpack.c.l.b16 %v233
    %v273 = vunpack.c.l.b16 %v234
    %v274 = vunpack.c.l.b16 %v235
    %v275 = vunpack.c.l.b16 %v236
    %v276 = vunpack.c.l.b16 %v237
    %v277 = vpack.c.b16 %v262, %v261
    %v278 = vpack.c.b16 %v264, %v263
    %v279 = vpack.c.b16 %v266, %v265
    %v280 = vpack.c.b16 %v268, %v267
    %v281 = vpack.c.b16 %v270, %v269
    %v282 = vpack.c.b16 %v272, %v271
    %v283 = vpack.c.b16 %v274, %v273
    %v284 = vpack.c.b16 %v276, %v275
    %293 = vmatprep.subr.bf16.mxu0 0
    %294 = vmatpush1.bf16.msra.mxu0 %v277
    %295 = vmatprep.subr.bf16.mxu0 0
    %296 = vmatpush1.bf16.msra.mxu0 %v278
    %297 = vmatprep.subr.bf16.mxu0 0
    %298 = vmatpush1.bf16.msra.mxu0 %v279
    %299 = vmatprep.subr.bf16.mxu0 0
    %300 = vmatpush1.bf16.msra.mxu0 %v280
    %301 = vmatprep.subr.bf16.mxu0 0
    %302 = vmatpush1.bf16.msra.mxu0 %v281
    %303 = vmatprep.subr.bf16.mxu0 0
    %304 = vmatpush1.bf16.msra.mxu0 %v282
    %305 = vmatprep.subr.bf16.mxu0 0
    %306 = vmatpush1.bf16.msra.mxu0 %v283
    %307 = vmatprep.subr.bf16.mxu0 0
    %308 = vmatpush1.bf16.msra.mxu0 %v284
    %309 = vmatprep.subr.bf16.mxu0 0
    %310 = vmatpush1.bf16.msra.mxu0 0
    %311 = vmatprep.subr.bf16.mxu0 0
    %312 = vmatpush1.bf16.msra.mxu0 0
    %313 = vmatprep.subr.bf16.mxu0 0
    %314 = vmatpush1.bf16.msra.mxu0 0
    %315 = vmatprep.subr.bf16.mxu0 0
    %316 = vmatpush1.bf16.msra.mxu0 0
    %317 = vmatprep.subr.bf16.mxu0 0
    %318 = vmatpush1.bf16.msra.mxu0 0
    %319 = vmatprep.subr.bf16.mxu0 0
    %320 = vmatpush1.bf16.msra.mxu0 0
    %321 = vmatprep.subr.bf16.mxu0 0
    %322 = vmatpush1.bf16.msra.mxu0 0
    %323 = vmatprep.subr.bf16.mxu0 0
    %324 = vmatpush1.bf16.msra.mxu0 0
    %325 = vmatprep.mubr.bf16.mxu0 0
    %326 = vmatmul.mubr.bf16.gmra.mrb[0].mxu0 %v221
    %v327 = vpop.f32.mrb[0].mxu0
    %v328 = vadd.f32 %v243, %v327
    %v329 = vpop.f32.mrb[0].mxu0
    %v330 = vpop.f32.mrb[0].mxu0
    %v331 = vpop.f32.mrb[0].mxu0
    %332 = vdwg.mxu0
    %333 = vmax.xlane.f32.xlu0 %v328
    %v334 = vpop.xlane.xlu0 %333
    %v335 = vsub.f32 %v328, %v334
    %v336 = vmul.f32 %v335, 1.442695
    %v337 = vpow.pop %v336
    %338 = vadd.xlane.f32.xlu0 %v337
    %v339 = vpop.xlane.xlu0 %338
    %v340 = vrcp.pop %v339
    %v341 = vmul.f32 %v337, %v340
    %342 = vst [vmem:[%s6] sm:$0xff] %v341
    %v343 = vlaneseq
    %v344 = vand.u32 %v343, 127
    %vm345 = vcmp.eq.f32.partialorder %v328, %v334
    %v346 = vsel %vm345, %v344, 2147483647
    %v347 = vand.u32 %v346, 65535
    %v348 = vshra.s32 %v346, 16
    %v349 = vcvt.s32.f32 %v347
    %v350 = vcvt.s32.f32 %v348
    %351 = vmin.xlane.f32.xlu0 %v350
    %v352 = vpop.xlane.xlu0 %351
    %vm353 = vcmp.eq.f32.partialorder %v350, %v352
    %v354 = vsel %vm353, %v349, inf
    %355 = vmin.xlane.f32.xlu0 %v354
    %v356 = vpop.xlane.xlu0 %355
    %v357 = vcvt.f32.s32 %v356
    %v358 = vcvt.f32.s32 %v352
    %v359 = vshll.u32 %v358, 16
    %v360 = vadd.s32 %v359, %v357
    %361 = vst [vmem:[%s5] sm:$0xff] %v360
    // Predicated region
    $region26: #{_mlp_forward_padded.1} parent=1 // pred_check
      _
    $region27: #{_mlp_forward_padded.1} parent=1 // pred_check_branch
      %363 = sbr.rel (0) target = $region29
    $region28: #{_mlp_forward_padded.1} parent=1 // pred_region
      _
    $region29: #{_mlp_forward_padded.1} parent=1 // pred_fallthru
      _
    // Predicated region
    $region30: #{_mlp_forward_padded.1} parent=1 // pred_check
      _
    $region31: #{_mlp_forward_padded.1} parent=1 // pred_check_branch
      %365 = sbr.rel (0) target = $region33
    $region32: #{_mlp_forward_padded.1} parent=1 // pred_region
      _
    $region33: #{_mlp_forward_padded.1} parent=1 // pred_fallthru
      _
    // Predicated region
    $region34: #{_mlp_forward_padded.1} parent=1 // pred_check
      _
    $region35: #{_mlp_forward_padded.1} parent=1 // pred_check_branch
      %367 = sbr.rel (0) target = $region37
    $region36: #{_mlp_forward_padded.1} parent=1 // pred_region
      _
    $region37: #{_mlp_forward_padded.1} parent=1 // pred_fallthru
      _
    // Predicated region
    $region38: #{_mlp_forward_padded.1} parent=1 // pred_check
      _
    $region39: #{_mlp_forward_padded.1} parent=1 // pred_check_branch
      %369 = sbr.rel (0) target = $region41
    $region40: #{_mlp_forward_padded.1} parent=1 // pred_region
      _
    $region41: #{_mlp_forward_padded.1} parent=1 // pred_fallthru
      _
    %370 = vsyncpa [#allocation3], 1

</llo_original>
